<compile_context>
chip_gen: v6e
topology: v6e:2x2x1
jax: 0.10.0
libtpu: 0.0.40
codegen_flags: <defaults>
</compile_context>

<pallas_src>
import numpy as np
import jax
import jax.numpy as jnp
from jax import lax
from jax.experimental import pallas as pl
from jax.experimental.pallas import tpu as pltpu  # noqa: F401


def build_grid(resolution):
    """Standard slot-attention grid: (1, H, W, 2*len(resolution)) in [0, 1]."""
    ranges = [np.linspace(0.0, 1.0, num=r) for r in resolution]
    g = np.meshgrid(*ranges, sparse=False, indexing="ij")
    g = np.stack(g, axis=-1).reshape(resolution[0], resolution[1], -1)
    g = np.expand_dims(g, axis=0).astype(np.float32)
    return np.concatenate([g, 1.0 - g], axis=-1)          # (1, H, W, 4)


def leaky_relu(x, slope=0.01):
    return jnp.where(x > 0, x, slope * x)


def encoder_head_kernel(x_ref, cb_ref, emb_ref, w1_ref, b1_ref, w2_ref, b2_ref, o_ref):
    # x_ref  : (B, C, HW)  raw last-conv output (bias/activation NOT yet applied)
    # cb_ref : (C, 1)      last conv bias (column)
    # emb_ref: (C, HW)     precomputed positional embedding W_e @ grid^T + b_e
    # w1_ref : (C, C)      encoder_out_layer Linear #1, native PyTorch (out, in)
    # b1_ref : (C, 1)
    # w2_ref : (C, C)      encoder_out_layer Linear #2, native PyTorch (out, in)
    # b2_ref : (C, 1)
    # o_ref  : (B*HW, C)   final output (row-major == module's (B, HW, C))
    B = x_ref.shape[0]
    conv_b = cb_ref[...]
    emb = emb_ref[...]

    # Fold the batch into the matmul N dimension: (C, B*HW), lane-dense.
    cols = []
    for i in range(B):                                    # unrolled at trace time
        h_i = leaky_relu(x_ref[i] + conv_b)               # last conv bias + act
        cols.append(h_i + emb)                            # SoftPositionEmbed add
    h = cols[0] if B == 1 else jnp.concatenate(cols, axis=-1)   # (C, B*HW)

    # encoder_out_layer, (out,in) x (in,N) orientation: result N=B*HW lane-dense.
    y = jnp.dot(w1_ref[...], h, preferred_element_type=jnp.float32) + b1_ref[...]
    y = jnp.where(y > 0, y, 0.01 * y)                     # LeakyReLU(0.01)
    y = jnp.dot(w2_ref[...], y, preferred_element_type=jnp.float32) + b2_ref[...]

    # Single epilogue transpose (XLU) to the module's (B*HW, C) layout.
    o_ref[...] = y.T.astype(o_ref.dtype)


def encoder_head(conv_raw_nchw, conv_b_last, grid_nhwc, we, be, w1, b1, w2, b2):
    """Fused last-conv epilogue + SoftPositionEmbed + flatten/permute + MLP.

    conv_raw_nchw: (B, C, H, W)  last conv output WITHOUT bias / activation
    conv_b_last  : (C,)          last conv bias
    grid_nhwc    : (1, H, W, Cin) positional grid buffer
    we (C, Cin), be (C,)         SoftPositionEmbed dense (PyTorch (out, in))
    w1, w2 (C, C), b1, b2 (C,)   encoder_out_layer Linears (PyTorch (out, in))
    returns (B, H*W, C)
    """
    B, C, H, W = conv_raw_nchw.shape
    HW = H * W
    Cin = grid_nhwc.shape[-1]

    # Layout plumbing only: contiguous reshape (no XLA transpose of features).
    x = conv_raw_nchw.reshape(B, C, HW)                   # (B, C, HW)

    # Batch-invariant positional embedding, precomputed once: (C, HW).
    grid_flat = grid_nhwc.reshape(HW, Cin)
    emb = (jnp.dot(grid_flat, we.T, precision=lax.Precision.HIGHEST) + be).T

    flops = 2 * 2 * C * C * (B * HW)                      # two MXU matmuls
    bytes_accessed = 4 * (x.size + emb.size + w1.size + w2.size
                          + b1.size + b2.size + C + B * HW * C)

    out = pl.pallas_call(
        encoder_head_kernel,
        out_shape=jax.ShapeDtypeStruct((B * HW, C), conv_raw_nchw.dtype),
        cost_estimate=pl.CostEstimate(flops=flops, transcendentals=0,
                                      bytes_accessed=bytes_accessed),
    )(x, conv_b_last.reshape(C, 1), emb,
      w1, b1.reshape(C, 1), w2, b2.reshape(C, 1))

    return out.reshape(B, HW, C)                          # free contiguous reshape


def encoder_forward(x, conv_ws, conv_bs, kernel_size, grid_buf, we, be, w1, b1, w2, b2):
    """Full Encoder.forward: conv stack (XLA) -> fused Pallas head."""
    pad = kernel_size // 2
    h = x
    n = len(conv_ws)
    for li, (w, b) in enumerate(zip(conv_ws, conv_bs)):
        # TODO(synk): Conv2d itself runs via XLA lax.conv, not as a Pallas kernel.
        h = lax.conv_general_dilated(
            h, w, window_strides=(1, 1), padding=[(pad, pad), (pad, pad)],
            dimension_numbers=("NCHW", "OIHW", "NCHW"))
        if li < n - 1:
            h = leaky_relu(h + b[None, :, None, None])
        # Last layer: bias + LeakyReLU are folded into the Pallas head.
    return encoder_head(h, conv_bs[-1], grid_buf, we, be, w1, b1, w2, b2)


if __name__ == "__main__":
    # Small Encoder config: in_channels=3, hidden_dims=(32, 32), kernel_size=5,
    # resolution=(16, 16) -> out_features=32, grid features = in_channels + 1 = 4.
    in_channels = 3
    hidden_dims = (32, 32)
    out_features = hidden_dims[-1]
    kernel_size = 5
    resolution = (16, 16)
    B = 2
    H, W = resolution
    HW = H * W

    key = jax.random.PRNGKey(0)
    keys = jax.random.split(key, 2 * len(hidden_dims) + 7)
    k_iter = iter(keys)

    x = jax.random.normal(next(k_iter), (B, in_channels, H, W), jnp.float32)

    # Conv stack parameters (PyTorch Conv2d layout: (out, in, kh, kw)).
    conv_ws, conv_bs = [], []
    ch = in_channels
    for h_dim in hidden_dims:
        conv_ws.append(jax.random.normal(next(k_iter),
                                         (h_dim, ch, kernel_size, kernel_size)) * 0.05)
        conv_bs.append(jax.random.normal(next(k_iter), (h_dim,)) * 0.05)
        ch = h_dim

    # SoftPositionEmbed dense: Linear(4 -> out_features), PyTorch (out, in) layout.
    we = jax.random.normal(next(k_iter), (out_features, in_channels + 1)) * 0.1
    be = jax.random.normal(next(k_iter), (out_features,)) * 0.1
    grid_buf = jnp.asarray(build_grid(resolution))        # (1, 16, 16, 4)

    # encoder_out_layer: Linear -> LeakyReLU -> Linear, PyTorch (out, in) layout.
    w1 = jax.random.normal(next(k_iter), (out_features, out_features)) * 0.1
    b1 = jax.random.normal(next(k_iter), (out_features,)) * 0.1
    w2 = jax.random.normal(next(k_iter), (out_features, out_features)) * 0.1
    b2 = jax.random.normal(next(k_iter), (out_features,)) * 0.1

    # ---- Encoder.forward: conv stack (XLA) -> fused Pallas head ----
    out = encoder_forward(x, conv_ws, conv_bs, kernel_size,
                          grid_buf, we, be, w1, b1, w2, b2)      # (B, 256, 32)
    out = jax.block_until_ready(out)

    # ---- Pure-JAX reference mirroring the PyTorch module ----
    P = lax.Precision.HIGHEST
    pad = kernel_size // 2
    hr = x
    for w, b in zip(conv_ws, conv_bs):
        hr = lax.conv_general_dilated(hr, w, (1, 1), [(pad, pad), (pad, pad)],
                                      dimension_numbers=("NCHW", "OIHW", "NCHW"))
        hr = leaky_relu(hr + b[None, :, None, None])
    emb = jnp.einsum("ohwc,kc->ohwk", grid_buf, we, precision=P) + be   # (1,H,W,C)
    emb = jnp.transpose(emb, (0, 3, 1, 2))                              # (1,C,H,W)
    hr = hr + emb
    hr = jnp.transpose(hr.reshape(B, out_features, HW), (0, 2, 1))      # (B,HW,C)
    yr = jnp.einsum("bsc,kc->bsk", hr, w1, precision=P) + b1
    yr = leaky_relu(yr)
    ref = jnp.einsum("bsc,kc->bsk", yr, w2, precision=P) + b2

    np.testing.assert_allclose(np.asarray(out), np.asarray(ref), rtol=1e-3, atol=2e-3)
    assert out.shape == (B, HW, out_features)

    print("KERNEL_OK")
</pallas_src>

<mosaic_0001>
module attributes {stable_mosaic.version = 11 : i64} {
  func.func @encoder_head_kernel(%arg0: memref<2x32x256xf32, #tpu.memory_space<vmem>>, %arg1: memref<32x1xf32, #tpu.memory_space<vmem>>, %arg2: memref<32x256xf32, #tpu.memory_space<vmem>>, %arg3: memref<32x32xf32, #tpu.memory_space<vmem>>, %arg4: memref<32x1xf32, #tpu.memory_space<vmem>>, %arg5: memref<32x32xf32, #tpu.memory_space<vmem>>, %arg6: memref<32x1xf32, #tpu.memory_space<vmem>>, %arg7: memref<512x32xf32, #tpu.memory_space<vmem>>) attributes {dimension_semantics = [], scalar_prefetch = 0 : i64, scratch_operands = 0 : i64, tpu.core_type = #tpu.core_type<tc>} {
    %c0 = arith.constant 0 : index
    %c0_0 = arith.constant 0 : index
    %0 = vector.load %arg1[%c0, %c0_0] : memref<32x1xf32, #tpu.memory_space<vmem>>, vector<32x1xf32>
    %c0_1 = arith.constant 0 : index
    %c0_2 = arith.constant 0 : index
    %1 = vector.load %arg2[%c0_1, %c0_2] : memref<32x256xf32, #tpu.memory_space<vmem>>, vector<32x256xf32>
    %c0_3 = arith.constant 0 : index
    %c0_4 = arith.constant 0 : index
    %c0_5 = arith.constant 0 : index
    %2 = vector.load %arg0[%c0_3, %c0_4, %c0_5] : memref<2x32x256xf32, #tpu.memory_space<vmem>>, vector<1x32x256xf32>
    %3 = vector.shape_cast %2 : vector<1x32x256xf32> to vector<32x256xf32>
    %4 = vector.broadcast %0 : vector<32x1xf32> to vector<32x256xf32>
    %5 = arith.addf %3, %4 : vector<32x256xf32>
    %cst = arith.constant 0.000000e+00 : f32
    %6 = vector.broadcast %cst : f32 to vector<32x256xf32>
    %7 = arith.cmpf ogt, %5, %6 : vector<32x256xf32>
    %cst_6 = arith.constant 0.00999999977 : f32
    %8 = vector.broadcast %cst_6 : f32 to vector<32x256xf32>
    %9 = arith.mulf %8, %5 : vector<32x256xf32>
    %10 = arith.select %7, %5, %9 : vector<32x256xi1>, vector<32x256xf32>
    %11 = arith.addf %10, %1 : vector<32x256xf32>
    %c1 = arith.constant 1 : index
    %c0_7 = arith.constant 0 : index
    %c0_8 = arith.constant 0 : index
    %12 = vector.load %arg0[%c1, %c0_7, %c0_8] : memref<2x32x256xf32, #tpu.memory_space<vmem>>, vector<1x32x256xf32>
    %13 = vector.shape_cast %12 : vector<1x32x256xf32> to vector<32x256xf32>
    %14 = vector.broadcast %0 : vector<32x1xf32> to vector<32x256xf32>
    %15 = arith.addf %13, %14 : vector<32x256xf32>
    %cst_9 = arith.constant 0.000000e+00 : f32
    %16 = vector.broadcast %cst_9 : f32 to vector<32x256xf32>
    %17 = arith.cmpf ogt, %15, %16 : vector<32x256xf32>
    %cst_10 = arith.constant 0.00999999977 : f32
    %18 = vector.broadcast %cst_10 : f32 to vector<32x256xf32>
    %19 = arith.mulf %18, %15 : vector<32x256xf32>
    %20 = arith.select %17, %15, %19 : vector<32x256xi1>, vector<32x256xf32>
    %21 = arith.addf %20, %1 : vector<32x256xf32>
    %22 = tpu.concatenate %11, %21 in 1 : vector<32x256xf32>, vector<32x256xf32> -> vector<32x512xf32>
    %c0_11 = arith.constant 0 : index
    %c0_12 = arith.constant 0 : index
    %23 = vector.load %arg3[%c0_11, %c0_12] : memref<32x32xf32, #tpu.memory_space<vmem>>, vector<32x32xf32>
    %cst_13 = arith.constant dense<0.000000e+00> : vector<32x512xf32>
    %24 = tpu.matmul %23, %22, %cst_13 {dimension_numbers = #tpu.dot_dimension_numbers<[1], [0], [0], [1], [0, 0, 1, 1], [], []>} : vector<32x32xf32>, vector<32x512xf32>, vector<32x512xf32> -> vector<32x512xf32>
    %c0_14 = arith.constant 0 : index
    %c0_15 = arith.constant 0 : index
    %25 = vector.load %arg4[%c0_14, %c0_15] : memref<32x1xf32, #tpu.memory_space<vmem>>, vector<32x1xf32>
    %26 = vector.broadcast %25 : vector<32x1xf32> to vector<32x512xf32>
    %27 = arith.addf %24, %26 : vector<32x512xf32>
    %cst_16 = arith.constant 0.000000e+00 : f32
    %28 = vector.broadcast %cst_16 : f32 to vector<32x512xf32>
    %29 = arith.cmpf ogt, %27, %28 : vector<32x512xf32>
    %cst_17 = arith.constant 0.00999999977 : f32
    %30 = vector.broadcast %cst_17 : f32 to vector<32x512xf32>
    %31 = arith.mulf %30, %27 : vector<32x512xf32>
    %32 = arith.select %29, %27, %31 : vector<32x512xi1>, vector<32x512xf32>
    %c0_18 = arith.constant 0 : index
    %c0_19 = arith.constant 0 : index
    %33 = vector.load %arg5[%c0_18, %c0_19] : memref<32x32xf32, #tpu.memory_space<vmem>>, vector<32x32xf32>
    %cst_20 = arith.constant dense<0.000000e+00> : vector<32x512xf32>
    %34 = tpu.matmul %33, %32, %cst_20 {dimension_numbers = #tpu.dot_dimension_numbers<[1], [0], [0], [1], [0, 0, 1, 1], [], []>} : vector<32x32xf32>, vector<32x512xf32>, vector<32x512xf32> -> vector<32x512xf32>
    %c0_21 = arith.constant 0 : index
    %c0_22 = arith.constant 0 : index
    %35 = vector.load %arg6[%c0_21, %c0_22] : memref<32x1xf32, #tpu.memory_space<vmem>>, vector<32x1xf32>
    %36 = vector.broadcast %35 : vector<32x1xf32> to vector<32x512xf32>
    %37 = arith.addf %34, %36 : vector<32x512xf32>
    %38 = tpu.transpose %37, [1, 0] : vector<32x512xf32> -> vector<512x32xf32>
    %c0_23 = arith.constant 0 : index
    %c0_24 = arith.constant 0 : index
    %39 = vector.load %arg7[%c0_23, %c0_24] : memref<512x32xf32, #tpu.memory_space<vmem>>, vector<512x32xf32>
    tpu.vector_store %arg7[%c0_23, %c0_24], %38 {strides = array<i32>} : memref<512x32xf32, #tpu.memory_space<vmem>>, vector<512x32xf32>,
    return
  }
}

</mosaic_0001>

<llo_original>
// kernel: tpu_custom_call.1
$region0: #{tpu_custom_call.1}
  #allocation0 [shape = 'u32[]', space=smem, size = 0x4, offset = 0x4, fixed_abs, tag = 'smem constant byte address 0x4 - core index']
  #allocation1 [shape = 'u32[144,128]{1,0:T(1,128)}', space=vmem, size = 0x12000, scoped, tag = 'internal scratch']
  %s0 = inlined_call_operand.hbm [shape: f32[2,32,256], index: 0, kind: input, shape index: {}]
  %s1 = inlined_call_operand.vmem [shape: f32[32,1], index: 1, kind: input, shape index: {}]
  %s2 = inlined_call_operand.vmem [shape: f32[32,256], index: 2, kind: input, shape index: {}]
  %s3 = inlined_call_operand.vmem [shape: f32[32,32], index: 3, kind: input, shape index: {}]
  %s4 = inlined_call_operand.vmem [shape: f32[32,1], index: 4, kind: input, shape index: {}]
  %s5 = inlined_call_operand.hbm [shape: f32[32,32], index: 5, kind: input, shape index: {}]
  %s6 = inlined_call_operand.vmem [shape: f32[32,1], index: 6, kind: input, shape index: {}]
  %s7 = inlined_call_operand.vmem [shape: f32[512,32], index: 7, kind: output, shape index: {}]
  %s8 = sld [smem:[#allocation0]]
  $region46: #{tpu_custom_call.1} parent=0
    _
  %s10 = ssub.s32 1, %s8
  %s11 = scalar_select 0, %s10, %s8
  $region1: #{tpu_custom_call.1} parent=0
    #allocation2 [shape = 'u8[65536]{0}', space=vmem, size = 0x10000, scoped, tag = 'input window, operand 0, single buffered']
    #allocation3 [shape = 's32[1]{0}', space=sflag, size = 0x4, scoped, tag = 'scoped memory for tpu_custom_call.1']
    #allocation4 [shape = 'u8[16384]{0}', space=vmem, size = 0x4000, scoped, tag = 'input window, operand 5, single buffered']
    #allocation5 [shape = 's32[1]{0}', space=sflag, size = 0x4, scoped, tag = 'scoped memory for tpu_custom_call.1']
    %12 = vsyncpa [#allocation3], 0
    %13 = vsyncpa [#allocation5], 0
    // Predicated region
    $region2: #{tpu_custom_call.1} parent=1 // pred_check
      _
    $region3: #{tpu_custom_call.1} parent=1 // pred_check_branch
      %15 = sbr.rel (0) target = $region5
    $region4: #{tpu_custom_call.1} parent=1 // pred_region
      %s17 = ssub.s32 2048, 2048
      %18 = vsyncadd [#allocation3], %s17
      %s19 = sshll.u32 [#allocation2], 4
      %s20 = int_to_ptr.vmem [resolvable:$true] %s19
      %25 = dma.hbm_to_vmem [thread:$0]  %s0, 2048, %s20, [#allocation3], 256, 256, 16
    $region5: #{tpu_custom_call.1} parent=1 // pred_fallthru
      _
    // Predicated region
    $region6: #{tpu_custom_call.1} parent=1 // pred_check
      _
    $region7: #{tpu_custom_call.1} parent=1 // pred_check_branch
      %27 = sbr.rel (0) target = $region9
    $region8: #{tpu_custom_call.1} parent=1 // pred_region
      _
    $region9: #{tpu_custom_call.1} parent=1 // pred_fallthru
      _
    // Predicated region
    $region10: #{tpu_custom_call.1} parent=1 // pred_check
      _
    $region11: #{tpu_custom_call.1} parent=1 // pred_check_branch
      %29 = sbr.rel (0) target = $region13
    $region12: #{tpu_custom_call.1} parent=1 // pred_region
      _
    $region13: #{tpu_custom_call.1} parent=1 // pred_fallthru
      _
    // Predicated region
    $region14: #{tpu_custom_call.1} parent=1 // pred_check
      _
    $region15: #{tpu_custom_call.1} parent=1 // pred_check_branch
      %31 = sbr.rel (0) target = $region17
    $region16: #{tpu_custom_call.1} parent=1 // pred_region
      _
    $region17: #{tpu_custom_call.1} parent=1 // pred_fallthru
      _
    // Predicated region
    $region18: #{tpu_custom_call.1} parent=1 // pred_check
      _
    $region19: #{tpu_custom_call.1} parent=1 // pred_check_branch
      %33 = sbr.rel (0) target = $region21
    $region20: #{tpu_custom_call.1} parent=1 // pred_region
      _
    $region21: #{tpu_custom_call.1} parent=1 // pred_fallthru
      _
    // Predicated region
    $region22: #{tpu_custom_call.1} parent=1 // pred_check
      _
    $region23: #{tpu_custom_call.1} parent=1 // pred_check_branch
      %35 = sbr.rel (0) target = $region25
    $region24: #{tpu_custom_call.1} parent=1 // pred_region
      %s37 = ssub.s32 512, 512
      %38 = vsyncadd [#allocation5], %s37
      %s39 = sshll.u32 [#allocation4], 4
      %s40 = int_to_ptr.vmem [resolvable:$true] %s39
      %45 = dma.hbm_to_vmem [thread:$0]  %s5, 512, %s40, [#allocation5], 128, 128, 8
    $region25: #{tpu_custom_call.1} parent=1 // pred_fallthru
      _
    // Predicated region
    $region26: #{tpu_custom_call.1} parent=1 // pred_check
      _
    $region27: #{tpu_custom_call.1} parent=1 // pred_check_branch
      %47 = sbr.rel (0) target = $region29
    $region28: #{tpu_custom_call.1} parent=1 // pred_region
      _
    $region29: #{tpu_custom_call.1} parent=1 // pred_fallthru
      _
    // Predicated region
    $region30: #{tpu_custom_call.1} parent=1 // pred_check
      _
    $region31: #{tpu_custom_call.1} parent=1 // pred_check_branch
      %49 = sbr.rel (0) target = $region33
    $region32: #{tpu_custom_call.1} parent=1 // pred_region
      %50 = dma.done [#allocation3], 2048
    $region33: #{tpu_custom_call.1} parent=1 // pred_fallthru
      _
    // Predicated region
    $region34: #{tpu_custom_call.1} parent=1 // pred_check
      _
    $region35: #{tpu_custom_call.1} parent=1 // pred_check_branch
      %52 = sbr.rel (0) target = $region37
    $region36: #{tpu_custom_call.1} parent=1 // pred_region
      %53 = dma.done [#allocation5], 512
    $region37: #{tpu_custom_call.1} parent=1 // pred_fallthru
      _
    %v54 = vld [vmem:[%s1] sm:$0xff]
    %v55 = vld [vmem:[%s1 + $0x8] sm:$0xff]
    %v56 = vld [vmem:[%s1 + $0x10] sm:$0xff]
    %v57 = vld [vmem:[%s1 + $0x18] sm:$0xff]
    %v58 = vld [vmem:[%s2] sm:$0xff]
    %v59 = vld [vmem:[%s2 + $0x8] sm:$0xff]
    %v60 = vld [vmem:[%s2 + $0x10] sm:$0xff]
    %v61 = vld [vmem:[%s2 + $0x18] sm:$0xff]
    %v62 = vld [vmem:[%s2 + $0x20] sm:$0xff]
    %v63 = vld [vmem:[%s2 + $0x28] sm:$0xff]
    %v64 = vld [vmem:[%s2 + $0x30] sm:$0xff]
    %v65 = vld [vmem:[%s2 + $0x38] sm:$0xff]
    %v66 = vld [vmem:[#allocation2] sm:$0xff]
    %v67 = vld [vmem:[#allocation2 + $0x8] sm:$0xff]
    %v68 = vld [vmem:[#allocation2 + $0x10] sm:$0xff]
    %v69 = vld [vmem:[#allocation2 + $0x18] sm:$0xff]
    %v70 = vld [vmem:[#allocation2 + $0x20] sm:$0xff]
    %v71 = vld [vmem:[#allocation2 + $0x28] sm:$0xff]
    %v72 = vld [vmem:[#allocation2 + $0x30] sm:$0xff]
    %v73 = vld [vmem:[#allocation2 + $0x38] sm:$0xff]
    %75 = vset.pattern.permute.xlu0 0
    %76 = vperm.xlu0 %75, %v54
    %v77 = vpop.permute.xlu0 %76
    %80 = vset.pattern.permute.xlu0 0
    %81 = vperm.xlu0 %80, %v55
    %v82 = vpop.permute.xlu0 %81
    %85 = vset.pattern.permute.xlu0 0
    %86 = vperm.xlu0 %85, %v56
    %v87 = vpop.permute.xlu0 %86
    %90 = vset.pattern.permute.xlu0 0
    %91 = vperm.xlu0 %90, %v57
    %v92 = vpop.permute.xlu0 %91
    %v94 = vadd.f32 %v66, %v77
    %v95 = vadd.f32 %v67, %v77
    %v96 = vadd.f32 %v68, %v82
    %v97 = vadd.f32 %v69, %v82
    %v98 = vadd.f32 %v70, %v87
    %v99 = vadd.f32 %v71, %v87
    %v100 = vadd.f32 %v72, %v92
    %v101 = vadd.f32 %v73, %v92
    %vm102 = vcmp.gt.f32.partialorder %v94, 0.0
    %vm103 = vcmp.gt.f32.partialorder %v95, 0.0
    %vm104 = vcmp.gt.f32.partialorder %v96, 0.0
    %vm105 = vcmp.gt.f32.partialorder %v97, 0.0
    %vm106 = vcmp.gt.f32.partialorder %v98, 0.0
    %vm107 = vcmp.gt.f32.partialorder %v99, 0.0
    %vm108 = vcmp.gt.f32.partialorder %v100, 0.0
    %vm109 = vcmp.gt.f32.partialorder %v101, 0.0
    %v110 = vmul.f32 %v94, 0.01
    %v111 = vmul.f32 %v95, 0.01
    %v112 = vmul.f32 %v96, 0.01
    %v113 = vmul.f32 %v97, 0.01
    %v114 = vmul.f32 %v98, 0.01
    %v115 = vmul.f32 %v99, 0.01
    %v116 = vmul.f32 %v100, 0.01
    %v117 = vmul.f32 %v101, 0.01
    %v118 = vsel %vm102, %v94, %v110
    %v119 = vsel %vm103, %v95, %v111
    %v120 = vsel %vm104, %v96, %v112
    %v121 = vsel %vm105, %v97, %v113
    %v122 = vsel %vm106, %v98, %v114
    %v123 = vsel %vm107, %v99, %v115
    %v124 = vsel %vm108, %v100, %v116
    %v125 = vsel %vm109, %v101, %v117
    %v126 = vadd.f32 %v118, %v58
    %v127 = vadd.f32 %v119, %v59
    %v128 = vadd.f32 %v120, %v60
    %v129 = vadd.f32 %v121, %v61
    %v130 = vadd.f32 %v122, %v62
    %v131 = vadd.f32 %v123, %v63
    %v132 = vadd.f32 %v124, %v64
    %v133 = vadd.f32 %v125, %v65
    %s134 = scalar_lea.vmem [#allocation2], 64
    %v135 = vld [vmem:[%s134] sm:$0xff]
    %v136 = vld [vmem:[%s134 + $0x8] sm:$0xff]
    %v137 = vld [vmem:[%s134 + $0x10] sm:$0xff]
    %v138 = vld [vmem:[%s134 + $0x18] sm:$0xff]
    %v139 = vld [vmem:[%s134 + $0x20] sm:$0xff]
    %v140 = vld [vmem:[%s134 + $0x28] sm:$0xff]
    %v141 = vld [vmem:[%s134 + $0x30] sm:$0xff]
    %v142 = vld [vmem:[%s134 + $0x38] sm:$0xff]
    %v143 = vadd.f32 %v135, %v77
    %v144 = vadd.f32 %v136, %v77
    %v145 = vadd.f32 %v137, %v82
    %v146 = vadd.f32 %v138, %v82
    %v147 = vadd.f32 %v139, %v87
    %v148 = vadd.f32 %v140, %v87
    %v149 = vadd.f32 %v141, %v92
    %v150 = vadd.f32 %v142, %v92
    %vm151 = vcmp.gt.f32.partialorder %v143, 0.0
    %vm152 = vcmp.gt.f32.partialorder %v144, 0.0
    %vm153 = vcmp.gt.f32.partialorder %v145, 0.0
    %vm154 = vcmp.gt.f32.partialorder %v146, 0.0
    %vm155 = vcmp.gt.f32.partialorder %v147, 0.0
    %vm156 = vcmp.gt.f32.partialorder %v148, 0.0
    %vm157 = vcmp.gt.f32.partialorder %v149, 0.0
    %vm158 = vcmp.gt.f32.partialorder %v150, 0.0
    %v159 = vmul.f32 %v143, 0.01
    %v160 = vmul.f32 %v144, 0.01
    %v161 = vmul.f32 %v145, 0.01
    %v162 = vmul.f32 %v146, 0.01
    %v163 = vmul.f32 %v147, 0.01
    %v164 = vmul.f32 %v148, 0.01
    %v165 = vmul.f32 %v149, 0.01
    %v166 = vmul.f32 %v150, 0.01
    %v167 = vsel %vm151, %v143, %v159
    %v168 = vsel %vm152, %v144, %v160
    %v169 = vsel %vm153, %v145, %v161
    %v170 = vsel %vm154, %v146, %v162
    %v171 = vsel %vm155, %v147, %v163
    %v172 = vsel %vm156, %v148, %v164
    %v173 = vsel %vm157, %v149, %v165
    %v174 = vsel %vm158, %v150, %v166
    %v175 = vadd.f32 %v167, %v58
    %v176 = vadd.f32 %v168, %v59
    %v177 = vadd.f32 %v169, %v60
    %v178 = vadd.f32 %v170, %v61
    %v179 = vadd.f32 %v171, %v62
    %v180 = vadd.f32 %v172, %v63
    %v181 = vadd.f32 %v173, %v64
    %v182 = vadd.f32 %v174, %v65
    %v183 = vld [vmem:[%s3] sm:$0xff]
    %v184 = vld [vmem:[%s3 + $0x8] sm:$0xff]
    %v185 = vld [vmem:[%s3 + $0x10] sm:$0xff]
    %v186 = vld [vmem:[%s3 + $0x18] sm:$0xff]
    %v187 = vld [vmem:[%s4] sm:$0xff]
    %v188 = vld [vmem:[%s4 + $0x8] sm:$0xff]
    %v189 = vld [vmem:[%s4 + $0x10] sm:$0xff]
    %v190 = vld [vmem:[%s4 + $0x18] sm:$0xff]
    %192 = vset.pattern.permute.xlu0 0
    %193 = vperm.xlu0 %192, %v187
    %v194 = vpop.permute.xlu0 %193
    %197 = vset.pattern.permute.xlu0 0
    %198 = vperm.xlu0 %197, %v188
    %v199 = vpop.permute.xlu0 %198
    %202 = vset.pattern.permute.xlu0 0
    %203 = vperm.xlu0 %202, %v189
    %v204 = vpop.permute.xlu0 %203
    %207 = vset.pattern.permute.xlu0 0
    %208 = vperm.xlu0 %207, %v190
    %v209 = vpop.permute.xlu0 %208
    %vm211 = vcmask 261120
    %v213 = vsel %vm211, %v183, 0
    %v216 = vsel %vm211, %v184, 0
    %v219 = vsel %vm211, %v185, 0
    %v222 = vsel %vm211, %v186, 0
    %224 = vmatprep.subr.mxu0 0.0
    %225 = vmatpush1.msra.mxu0 0.0
    %226 = vmatprep.subr.mxu0 0.0
    %227 = vmatpush1.msra.mxu0 0.0
    %228 = vmatprep.subr.mxu0 0.0
    %229 = vmatpush1.msra.mxu0 0.0
    %230 = vmatprep.subr.mxu0 0.0
    %231 = vmatpush1.msra.mxu0 0.0
    %232 = vmatprep.subr.mxu0 0.0
    %233 = vmatpush1.msra.mxu0 0.0
    %234 = vmatprep.subr.mxu0 0.0
    %235 = vmatpush1.msra.mxu0 0.0
    %236 = vmatprep.subr.mxu0 0.0
    %237 = vmatpush1.msra.mxu0 0.0
    %238 = vmatprep.subr.mxu0 0.0
    %239 = vmatpush1.msra.mxu0 0.0
    %240 = vmatprep.subr.mxu0 0.0
    %241 = vmatpush1.msra.mxu0 0.0
    %242 = vmatprep.subr.mxu0 0.0
    %243 = vmatpush1.msra.mxu0 0.0
    %244 = vmatprep.subr.mxu0 0.0
    %245 = vmatpush1.msra.mxu0 0.0
    %246 = vmatprep.subr.mxu0 0.0
    %247 = vmatpush1.msra.mxu0 0.0
    %248 = vmatprep.subr.mxu0 %v133
    %249 = vmatpush1.msra.mxu0 %v132
    %250 = vmatprep.subr.mxu0 %v131
    %251 = vmatpush1.msra.mxu0 %v130
    %252 = vmatprep.subr.mxu0 %v129
    %253 = vmatpush1.msra.mxu0 %v128
    %254 = vmatprep.subr.mxu0 %v127
    %255 = vmatpush1.msra.mxu0 %v126
    %256 = vmatprep.subr.mxu0 0.0
    %257 = vmatpush2.msra.mxu0 0.0
    %258 = vmatprep.subr.mxu0 0.0
    %259 = vmatpush2.msra.mxu0 0.0
    %260 = vmatprep.subr.mxu0 0.0
    %261 = vmatpush2.msra.mxu0 0.0
    %262 = vmatprep.subr.mxu0 0.0
    %263 = vmatpush2.msra.mxu0 0.0
    %264 = vmatprep.subr.mxu0 0.0
    %265 = vmatpush2.msra.mxu0 0.0
    %266 = vmatprep.subr.mxu0 0.0
    %267 = vmatpush2.msra.mxu0 0.0
    %268 = vmatprep.subr.mxu0 0.0
    %269 = vmatpush2.msra.mxu0 0.0
    %270 = vmatprep.subr.mxu0 0.0
    %271 = vmatpush2.msra.mxu0 0.0
    %272 = vmatprep.subr.mxu0 0.0
    %273 = vmatpush2.msra.mxu0 0.0
    %274 = vmatprep.subr.mxu0 0.0
    %275 = vmatpush2.msra.mxu0 0.0
    %276 = vmatprep.subr.mxu0 0.0
    %277 = vmatpush2.msra.mxu0 0.0
    %278 = vmatprep.subr.mxu0 0.0
    %279 = vmatpush2.msra.mxu0 0.0
    %280 = vmatprep.subr.mxu0 0.0
    %281 = vmatpush2.msra.mxu0 0.0
    %282 = vmatprep.subr.mxu0 0.0
    %283 = vmatpush2.msra.mxu0 0.0
    %284 = vmatprep.subr.mxu0 0.0
    %285 = vmatpush2.msra.mxu0 0.0
    %286 = vmatprep.subr.mxu0 0.0
    %287 = vmatpush2.msra.mxu0 0.0
    %288 = vmatprep.mubr.f32.mxu0 0.0
    %289 = vmatmul.mubr.f32.gmra.mxu0 %v213
    %v290 = vpop.f32.mrf.mxu0
    %v291 = vadd.f32 %v194, %v290
    %v292 = vpop.f32.mrf.mxu0
    %v293 = vadd.f32 %v194, %v292
    %294 = vmatprep.mubr.f32.mxu0 0.0
    %295 = vmatmul.mubr.f32.gmra.mxu0 %v216
    %v296 = vpop.f32.mrf.mxu0
    %v297 = vadd.f32 %v199, %v296
    %v298 = vpop.f32.mrf.mxu0
    %v299 = vadd.f32 %v199, %v298
    %300 = vmatprep.mubr.f32.mxu0 0.0
    %301 = vmatmul.mubr.f32.gmra.mxu0 %v219
    %v302 = vpop.f32.mrf.mxu0
    %v303 = vadd.f32 %v204, %v302
    %v304 = vpop.f32.mrf.mxu0
    %v305 = vadd.f32 %v204, %v304
    %306 = vmatprep.mubr.f32.mxu0 0.0
    %307 = vmatmul.mubr.f32.gmra.mxu0 %v222
    %v308 = vpop.f32.mrf.mxu0
    %v309 = vadd.f32 %v209, %v308
    %v310 = vpop.f32.mrf.mxu0
    %v311 = vadd.f32 %v209, %v310
    %312 = vdwg.mxu0
    %313 = vmatprep.subr.mxu0 0.0
    %314 = vmatpush1.msra.mxu0 0.0
    %315 = vmatprep.subr.mxu0 0.0
    %316 = vmatpush1.msra.mxu0 0.0
    %317 = vmatprep.subr.mxu0 0.0
    %318 = vmatpush1.msra.mxu0 0.0
    %319 = vmatprep.subr.mxu0 0.0
    %320 = vmatpush1.msra.mxu0 0.0
    %321 = vmatprep.subr.mxu0 0.0
    %322 = vmatpush1.msra.mxu0 0.0
    %323 = vmatprep.subr.mxu0 0.0
    %324 = vmatpush1.msra.mxu0 0.0
    %325 = vmatprep.subr.mxu0 0.0
    %326 = vmatpush1.msra.mxu0 0.0
    %327 = vmatprep.subr.mxu0 0.0
    %328 = vmatpush1.msra.mxu0 0.0
    %329 = vmatprep.subr.mxu0 0.0
    %330 = vmatpush1.msra.mxu0 0.0
    %331 = vmatprep.subr.mxu0 0.0
    %332 = vmatpush1.msra.mxu0 0.0
    %333 = vmatprep.subr.mxu0 0.0
    %334 = vmatpush1.msra.mxu0 0.0
    %335 = vmatprep.subr.mxu0 0.0
    %336 = vmatpush1.msra.mxu0 0.0
    %337 = vmatprep.subr.mxu0 %v182
    %338 = vmatpush1.msra.mxu0 %v181
    %339 = vmatprep.subr.mxu0 %v180
    %340 = vmatpush1.msra.mxu0 %v179
    %341 = vmatprep.subr.mxu0 %v178
    %342 = vmatpush1.msra.mxu0 %v177
    %343 = vmatprep.subr.mxu0 %v176
    %344 = vmatpush1.msra.mxu0 %v175
    %345 = vmatprep.subr.mxu0 0.0
    %346 = vmatpush2.msra.mxu0 0.0
    %347 = vmatprep.subr.mxu0 0.0
    %348 = vmatpush2.msra.mxu0 0.0
    %349 = vmatprep.subr.mxu0 0.0
    %350 = vmatpush2.msra.mxu0 0.0
    %351 = vmatprep.subr.mxu0 0.0
    %352 = vmatpush2.msra.mxu0 0.0
    %353 = vmatprep.subr.mxu0 0.0
    %354 = vmatpush2.msra.mxu0 0.0
    %355 = vmatprep.subr.mxu0 0.0
    %356 = vmatpush2.msra.mxu0 0.0
    %357 = vmatprep.subr.mxu0 0.0
    %358 = vmatpush2.msra.mxu0 0.0
    %359 = vmatprep.subr.mxu0 0.0
    %360 = vmatpush2.msra.mxu0 0.0
    %361 = vmatprep.subr.mxu0 0.0
    %362 = vmatpush2.msra.mxu0 0.0
    %363 = vmatprep.subr.mxu0 0.0
    %364 = vmatpush2.msra.mxu0 0.0
    %365 = vmatprep.subr.mxu0 0.0
    %366 = vmatpush2.msra.mxu0 0.0
    %367 = vmatprep.subr.mxu0 0.0
    %368 = vmatpush2.msra.mxu0 0.0
    %369 = vmatprep.subr.mxu0 0.0
    %370 = vmatpush2.msra.mxu0 0.0
    %371 = vmatprep.subr.mxu0 0.0
    %372 = vmatpush2.msra.mxu0 0.0
    %373 = vmatprep.subr.mxu0 0.0
    %374 = vmatpush2.msra.mxu0 0.0
    %375 = vmatprep.subr.mxu0 0.0
    %376 = vmatpush2.msra.mxu0 0.0
    %377 = vmatprep.mubr.f32.mxu0 0.0
    %378 = vmatmul.mubr.f32.gmra.mxu0 %v213
    %v379 = vpop.f32.mrf.mxu0
    %v380 = vadd.f32 %v194, %v379
    %v381 = vpop.f32.mrf.mxu0
    %v382 = vadd.f32 %v194, %v381
    %383 = vmatprep.mubr.f32.mxu0 0.0
    %384 = vmatmul.mubr.f32.gmra.mxu0 %v216
    %v385 = vpop.f32.mrf.mxu0
    %v386 = vadd.f32 %v199, %v385
    %v387 = vpop.f32.mrf.mxu0
    %v388 = vadd.f32 %v199, %v387
    %389 = vmatprep.mubr.f32.mxu0 0.0
    %390 = vmatmul.mubr.f32.gmra.mxu0 %v219
    %v391 = vpop.f32.mrf.mxu0
    %v392 = vadd.f32 %v204, %v391
    %v393 = vpop.f32.mrf.mxu0
    %v394 = vadd.f32 %v204, %v393
    %395 = vmatprep.mubr.f32.mxu0 0.0
    %396 = vmatmul.mubr.f32.gmra.mxu0 %v222
    %v397 = vpop.f32.mrf.mxu0
    %v398 = vadd.f32 %v209, %v397
    %v399 = vpop.f32.mrf.mxu0
    %v400 = vadd.f32 %v209, %v399
    %401 = vdwg.mxu0
    %vm402 = vcmp.gt.f32.partialorder %v291, 0.0
    %vm403 = vcmp.gt.f32.partialorder %v293, 0.0
    %vm404 = vcmp.gt.f32.partialorder %v380, 0.0
    %vm405 = vcmp.gt.f32.partialorder %v382, 0.0
    %vm406 = vcmp.gt.f32.partialorder %v297, 0.0
    %vm407 = vcmp.gt.f32.partialorder %v299, 0.0
    %vm408 = vcmp.gt.f32.partialorder %v386, 0.0
    %vm409 = vcmp.gt.f32.partialorder %v388, 0.0
    %vm410 = vcmp.gt.f32.partialorder %v303, 0.0
    %vm411 = vcmp.gt.f32.partialorder %v305, 0.0
    %vm412 = vcmp.gt.f32.partialorder %v392, 0.0
    %vm413 = vcmp.gt.f32.partialorder %v394, 0.0
    %vm414 = vcmp.gt.f32.partialorder %v309, 0.0
    %vm415 = vcmp.gt.f32.partialorder %v311, 0.0
    %vm416 = vcmp.gt.f32.partialorder %v398, 0.0
    %vm417 = vcmp.gt.f32.partialorder %v400, 0.0
    %v418 = vmul.f32 %v291, 0.01
    %v419 = vmul.f32 %v293, 0.01
    %v420 = vmul.f32 %v380, 0.01
    %v421 = vmul.f32 %v382, 0.01
    %v422 = vmul.f32 %v297, 0.01
    %v423 = vmul.f32 %v299, 0.01
    %v424 = vmul.f32 %v386, 0.01
    %v425 = vmul.f32 %v388, 0.01
    %v426 = vmul.f32 %v303, 0.01
    %v427 = vmul.f32 %v305, 0.01
    %v428 = vmul.f32 %v392, 0.01
    %v429 = vmul.f32 %v394, 0.01
    %v430 = vmul.f32 %v309, 0.01
    %v431 = vmul.f32 %v311, 0.01
    %v432 = vmul.f32 %v398, 0.01
    %v433 = vmul.f32 %v400, 0.01
    %v434 = vsel %vm402, %v291, %v418
    %v435 = vsel %vm403, %v293, %v419
    %v436 = vsel %vm404, %v380, %v420
    %v437 = vsel %vm405, %v382, %v421
    %v438 = vsel %vm406, %v297, %v422
    %v439 = vsel %vm407, %v299, %v423
    %v440 = vsel %vm408, %v386, %v424
    %v441 = vsel %vm409, %v388, %v425
    %v442 = vsel %vm410, %v303, %v426
    %v443 = vsel %vm411, %v305, %v427
    %v444 = vsel %vm412, %v392, %v428
    %v445 = vsel %vm413, %v394, %v429
    %v446 = vsel %vm414, %v309, %v430
    %v447 = vsel %vm415, %v311, %v431
    %v448 = vsel %vm416, %v398, %v432
    %v449 = vsel %vm417, %v400, %v433
    %v450 = vld [vmem:[#allocation4] sm:$0xff]
    %v451 = vld [vmem:[#allocation4 + $0x8] sm:$0xff]
    %v452 = vld [vmem:[#allocation4 + $0x10] sm:$0xff]
    %v453 = vld [vmem:[#allocation4 + $0x18] sm:$0xff]
    %v454 = vld [vmem:[%s6] sm:$0xff]
    %v455 = vld [vmem:[%s6 + $0x8] sm:$0xff]
    %v456 = vld [vmem:[%s6 + $0x10] sm:$0xff]
    %v457 = vld [vmem:[%s6 + $0x18] sm:$0xff]
    %459 = vset.pattern.permute.xlu0 0
    %460 = vperm.xlu0 %459, %v454
    %v461 = vpop.permute.xlu0 %460
    %464 = vset.pattern.permute.xlu0 0
    %465 = vperm.xlu0 %464, %v455
    %v466 = vpop.permute.xlu0 %465
    %469 = vset.pattern.permute.xlu0 0
    %470 = vperm.xlu0 %469, %v456
    %v471 = vpop.permute.xlu0 %470
    %474 = vset.pattern.permute.xlu0 0
    %475 = vperm.xlu0 %474, %v457
    %v476 = vpop.permute.xlu0 %475
    %v479 = vsel %vm211, %v450, 0
    %v482 = vsel %vm211, %v451, 0
    %v485 = vsel %vm211, %v452, 0
    %v488 = vsel %vm211, %v453, 0
    %490 = vmatprep.subr.mxu0 0.0
    %491 = vmatpush1.msra.mxu0 0.0
    %492 = vmatprep.subr.mxu0 0.0
    %493 = vmatpush1.msra.mxu0 0.0
    %494 = vmatprep.subr.mxu0 0.0
    %495 = vmatpush1.msra.mxu0 0.0
    %496 = vmatprep.subr.mxu0 0.0
    %497 = vmatpush1.msra.mxu0 0.0
    %498 = vmatprep.subr.mxu0 0.0
    %499 = vmatpush1.msra.mxu0 0.0
    %500 = vmatprep.subr.mxu0 0.0
    %501 = vmatpush1.msra.mxu0 0.0
    %502 = vmatprep.subr.mxu0 0.0
    %503 = vmatpush1.msra.mxu0 0.0
    %504 = vmatprep.subr.mxu0 0.0
    %505 = vmatpush1.msra.mxu0 0.0
    %506 = vmatprep.subr.mxu0 0.0
    %507 = vmatpush1.msra.mxu0 0.0
    %508 = vmatprep.subr.mxu0 0.0
    %509 = vmatpush1.msra.mxu0 0.0
    %510 = vmatprep.subr.mxu0 0.0
    %511 = vmatpush1.msra.mxu0 0.0
    %512 = vmatprep.subr.mxu0 0.0
    %513 = vmatpush1.msra.mxu0 0.0
    %514 = vmatprep.subr.mxu0 %v447
    %515 = vmatpush1.msra.mxu0 %v446
    %516 = vmatprep.subr.mxu0 %v443
    %517 = vmatpush1.msra.mxu0 %v442
    %518 = vmatprep.subr.mxu0 %v439
    %519 = vmatpush1.msra.mxu0 %v438
    %520 = vmatprep.subr.mxu0 %v435
    %521 = vmatpush1.msra.mxu0 %v434
    %522 = vmatprep.subr.mxu0 0.0
    %523 = vmatpush2.msra.mxu0 0.0
    %524 = vmatprep.subr.mxu0 0.0
    %525 = vmatpush2.msra.mxu0 0.0
    %526 = vmatprep.subr.mxu0 0.0
    %527 = vmatpush2.msra.mxu0 0.0
    %528 = vmatprep.subr.mxu0 0.0
    %529 = vmatpush2.msra.mxu0 0.0
    %530 = vmatprep.subr.mxu0 0.0
    %531 = vmatpush2.msra.mxu0 0.0
    %532 = vmatprep.subr.mxu0 0.0
    %533 = vmatpush2.msra.mxu0 0.0
    %534 = vmatprep.subr.mxu0 0.0
    %535 = vmatpush2.msra.mxu0 0.0
    %536 = vmatprep.subr.mxu0 0.0
    %537 = vmatpush2.msra.mxu0 0.0
    %538 = vmatprep.subr.mxu0 0.0
    %539 = vmatpush2.msra.mxu0 0.0
    %540 = vmatprep.subr.mxu0 0.0
    %541 = vmatpush2.msra.mxu0 0.0
    %542 = vmatprep.subr.mxu0 0.0
    %543 = vmatpush2.msra.mxu0 0.0
    %544 = vmatprep.subr.mxu0 0.0
    %545 = vmatpush2.msra.mxu0 0.0
    %546 = vmatprep.subr.mxu0 0.0
    %547 = vmatpush2.msra.mxu0 0.0
    %548 = vmatprep.subr.mxu0 0.0
    %549 = vmatpush2.msra.mxu0 0.0
    %550 = vmatprep.subr.mxu0 0.0
    %551 = vmatpush2.msra.mxu0 0.0
    %552 = vmatprep.subr.mxu0 0.0
    %553 = vmatpush2.msra.mxu0 0.0
    %554 = vmatprep.mubr.f32.mxu0 0.0
    %555 = vmatmul.mubr.f32.gmra.mxu0 %v479
    %v556 = vpop.f32.mrf.mxu0
    %v557 = vadd.f32 %v461, %v556
    %v558 = vpop.f32.mrf.mxu0
    %v559 = vadd.f32 %v461, %v558
    %560 = vmatprep.mubr.f32.mxu0 0.0
    %561 = vmatmul.mubr.f32.gmra.mxu0 %v482
    %v562 = vpop.f32.mrf.mxu0
    %v563 = vadd.f32 %v466, %v562
    %v564 = vpop.f32.mrf.mxu0
    %v565 = vadd.f32 %v466, %v564
    %566 = vmatprep.mubr.f32.mxu0 0.0
    %567 = vmatmul.mubr.f32.gmra.mxu0 %v485
    %v568 = vpop.f32.mrf.mxu0
    %v569 = vadd.f32 %v471, %v568
    %v570 = vpop.f32.mrf.mxu0
    %v571 = vadd.f32 %v471, %v570
    %572 = vmatprep.mubr.f32.mxu0 0.0
    %573 = vmatmul.mubr.f32.gmra.mxu0 %v488
    %v574 = vpop.f32.mrf.mxu0
    %v575 = vadd.f32 %v476, %v574
    %v576 = vpop.f32.mrf.mxu0
    %v577 = vadd.f32 %v476, %v576
    %578 = vdwg.mxu0
    %579 = vmatprep.subr.mxu0 0.0
    %580 = vmatpush1.msra.mxu0 0.0
    %581 = vmatprep.subr.mxu0 0.0
    %582 = vmatpush1.msra.mxu0 0.0
    %583 = vmatprep.subr.mxu0 0.0
    %584 = vmatpush1.msra.mxu0 0.0
    %585 = vmatprep.subr.mxu0 0.0
    %586 = vmatpush1.msra.mxu0 0.0
    %587 = vmatprep.subr.mxu0 0.0
    %588 = vmatpush1.msra.mxu0 0.0
    %589 = vmatprep.subr.mxu0 0.0
    %590 = vmatpush1.msra.mxu0 0.0
    %591 = vmatprep.subr.mxu0 0.0
    %592 = vmatpush1.msra.mxu0 0.0
    %593 = vmatprep.subr.mxu0 0.0
    %594 = vmatpush1.msra.mxu0 0.0
    %595 = vmatprep.subr.mxu0 0.0
    %596 = vmatpush1.msra.mxu0 0.0
    %597 = vmatprep.subr.mxu0 0.0
    %598 = vmatpush1.msra.mxu0 0.0
    %599 = vmatprep.subr.mxu0 0.0
    %600 = vmatpush1.msra.mxu0 0.0
    %601 = vmatprep.subr.mxu0 0.0
    %602 = vmatpush1.msra.mxu0 0.0
    %603 = vmatprep.subr.mxu0 %v449
    %604 = vmatpush1.msra.mxu0 %v448
    %605 = vmatprep.subr.mxu0 %v445
    %606 = vmatpush1.msra.mxu0 %v444
    %607 = vmatprep.subr.mxu0 %v441
    %608 = vmatpush1.msra.mxu0 %v440
    %609 = vmatprep.subr.mxu0 %v437
    %610 = vmatpush1.msra.mxu0 %v436
    %611 = vmatprep.subr.mxu0 0.0
    %612 = vmatpush2.msra.mxu0 0.0
    %613 = vmatprep.subr.mxu0 0.0
    %614 = vmatpush2.msra.mxu0 0.0
    %615 = vmatprep.subr.mxu0 0.0
    %616 = vmatpush2.msra.mxu0 0.0
    %617 = vmatprep.subr.mxu0 0.0
    %618 = vmatpush2.msra.mxu0 0.0
    %619 = vmatprep.subr.mxu0 0.0
    %620 = vmatpush2.msra.mxu0 0.0
    %621 = vmatprep.subr.mxu0 0.0
    %622 = vmatpush2.msra.mxu0 0.0
    %623 = vmatprep.subr.mxu0 0.0
    %624 = vmatpush2.msra.mxu0 0.0
    %625 = vmatprep.subr.mxu0 0.0
    %626 = vmatpush2.msra.mxu0 0.0
    %627 = vmatprep.subr.mxu0 0.0
    %628 = vmatpush2.msra.mxu0 0.0
    %629 = vmatprep.subr.mxu0 0.0
    %630 = vmatpush2.msra.mxu0 0.0
    %631 = vmatprep.subr.mxu0 0.0
    %632 = vmatpush2.msra.mxu0 0.0
    %633 = vmatprep.subr.mxu0 0.0
    %634 = vmatpush2.msra.mxu0 0.0
    %635 = vmatprep.subr.mxu0 0.0
    %636 = vmatpush2.msra.mxu0 0.0
    %637 = vmatprep.subr.mxu0 0.0
    %638 = vmatpush2.msra.mxu0 0.0
    %639 = vmatprep.subr.mxu0 0.0
    %640 = vmatpush2.msra.mxu0 0.0
    %641 = vmatprep.subr.mxu0 0.0
    %642 = vmatpush2.msra.mxu0 0.0
    %643 = vmatprep.mubr.f32.mxu0 0.0
    %644 = vmatmul.mubr.f32.gmra.mxu0 %v479
    %v645 = vpop.f32.mrf.mxu0
    %v646 = vadd.f32 %v461, %v645
    %v647 = vpop.f32.mrf.mxu0
    %v648 = vadd.f32 %v461, %v647
    %649 = vmatprep.mubr.f32.mxu0 0.0
    %650 = vmatmul.mubr.f32.gmra.mxu0 %v482
    %v651 = vpop.f32.mrf.mxu0
    %v652 = vadd.f32 %v466, %v651
    %v653 = vpop.f32.mrf.mxu0
    %v654 = vadd.f32 %v466, %v653
    %655 = vmatprep.mubr.f32.mxu0 0.0
    %656 = vmatmul.mubr.f32.gmra.mxu0 %v485
    %v657 = vpop.f32.mrf.mxu0
    %v658 = vadd.f32 %v471, %v657
    %v659 = vpop.f32.mrf.mxu0
    %v660 = vadd.f32 %v471, %v659
    %661 = vmatprep.mubr.f32.mxu0 0.0
    %662 = vmatmul.mubr.f32.gmra.mxu0 %v488
    %v663 = vpop.f32.mrf.mxu0
    %v664 = vadd.f32 %v476, %v663
    %v665 = vpop.f32.mrf.mxu0
    %v666 = vadd.f32 %v476, %v665
    %667 = vdwg.mxu0
    %668 = vxpose.xlu0.b32.start [1/16] %v557, 128
    %669 = vxpose.xlu0.b32.cont [2/16] %v563, 128
    %670 = vxpose.xlu0.b32.cont [3/16] %v569, 128
    %671 = vxpose.xlu0.b32.cont [4/16] %v575, 128
    %672 = vxpose.xlu0.b32.cont [5/16] 0.0, 128
    %673 = vxpose.xlu0.b32.cont [6/16] 0.0, 128
    %674 = vxpose.xlu0.b32.cont [7/16] 0.0, 128
    %675 = vxpose.xlu0.b32.cont [8/16] 0.0, 128
    %676 = vxpose.xlu0.b32.cont [9/16] 0.0, 128
    %677 = vxpose.xlu0.b32.cont [10/16] 0.0, 128
    %678 = vxpose.xlu0.b32.cont [11/16] 0.0, 128
    %679 = vxpose.xlu0.b32.cont [12/16] 0.0, 128
    %680 = vxpose.xlu0.b32.cont [13/16] 0.0, 128
    %681 = vxpose.xlu0.b32.cont [14/16] 0.0, 128
    %682 = vxpose.xlu0.b32.cont [15/16] 0.0, 128
    %683 = vxpose.xlu0.b32.end [16/16] 0.0, 128
    %v684 = vpop.trf.xlu0
    %v685 = vpop.trf.xlu0
    %v686 = vpop.trf.xlu0
    %v687 = vpop.trf.xlu0
    %v688 = vpop.trf.xlu0
    %v689 = vpop.trf.xlu0
    %v690 = vpop.trf.xlu0
    %v691 = vpop.trf.xlu0
    %v692 = vpop.trf.xlu0
    %v693 = vpop.trf.xlu0
    %v694 = vpop.trf.xlu0
    %v695 = vpop.trf.xlu0
    %v696 = vpop.trf.xlu0
    %v697 = vpop.trf.xlu0
    %v698 = vpop.trf.xlu0
    %v699 = vpop.trf.xlu0
    %700 = vxpose.xlu0.b32.start [1/16] %v559, 128
    %701 = vxpose.xlu0.b32.cont [2/16] %v565, 128
    %702 = vxpose.xlu0.b32.cont [3/16] %v571, 128
    %703 = vxpose.xlu0.b32.cont [4/16] %v577, 128
    %704 = vxpose.xlu0.b32.cont [5/16] 0.0, 128
    %705 = vxpose.xlu0.b32.cont [6/16] 0.0, 128
    %706 = vxpose.xlu0.b32.cont [7/16] 0.0, 128
    %707 = vxpose.xlu0.b32.cont [8/16] 0.0, 128
    %708 = vxpose.xlu0.b32.cont [9/16] 0.0, 128
    %709 = vxpose.xlu0.b32.cont [10/16] 0.0, 128
    %710 = vxpose.xlu0.b32.cont [11/16] 0.0, 128
    %711 = vxpose.xlu0.b32.cont [12/16] 0.0, 128
    %712 = vxpose.xlu0.b32.cont [13/16] 0.0, 128
    %713 = vxpose.xlu0.b32.cont [14/16] 0.0, 128
    %714 = vxpose.xlu0.b32.cont [15/16] 0.0, 128
    %715 = vxpose.xlu0.b32.end [16/16] 0.0, 128
    %v716 = vpop.trf.xlu0
    %v717 = vpop.trf.xlu0
    %v718 = vpop.trf.xlu0
    %v719 = vpop.trf.xlu0
    %v720 = vpop.trf.xlu0
    %v721 = vpop.trf.xlu0
    %v722 = vpop.trf.xlu0
    %v723 = vpop.trf.xlu0
    %v724 = vpop.trf.xlu0
    %v725 = vpop.trf.xlu0
    %v726 = vpop.trf.xlu0
    %v727 = vpop.trf.xlu0
    %v728 = vpop.trf.xlu0
    %v729 = vpop.trf.xlu0
    %v730 = vpop.trf.xlu0
    %v731 = vpop.trf.xlu0
    %732 = vxpose.xlu0.b32.start [1/16] %v646, 128
    %733 = vxpose.xlu0.b32.cont [2/16] %v652, 128
    %734 = vxpose.xlu0.b32.cont [3/16] %v658, 128
    %735 = vxpose.xlu0.b32.cont [4/16] %v664, 128
    %736 = vxpose.xlu0.b32.cont [5/16] 0.0, 128
    %737 = vxpose.xlu0.b32.cont [6/16] 0.0, 128
    %738 = vxpose.xlu0.b32.cont [7/16] 0.0, 128
    %739 = vxpose.xlu0.b32.cont [8/16] 0.0, 128
    %740 = vxpose.xlu0.b32.cont [9/16] 0.0, 128
    %741 = vxpose.xlu0.b32.cont [10/16] 0.0, 128
    %742 = vxpose.xlu0.b32.cont [11/16] 0.0, 128
    %743 = vxpose.xlu0.b32.cont [12/16] 0.0, 128
    %744 = vxpose.xlu0.b32.cont [13/16] 0.0, 128
    %745 = vxpose.xlu0.b32.cont [14/16] 0.0, 128
    %746 = vxpose.xlu0.b32.cont [15/16] 0.0, 128
    %747 = vxpose.xlu0.b32.end [16/16] 0.0, 128
    %v748 = vpop.trf.xlu0
    %v749 = vpop.trf.xlu0
    %v750 = vpop.trf.xlu0
    %v751 = vpop.trf.xlu0
    %v752 = vpop.trf.xlu0
    %v753 = vpop.trf.xlu0
    %v754 = vpop.trf.xlu0
    %v755 = vpop.trf.xlu0
    %v756 = vpop.trf.xlu0
    %v757 = vpop.trf.xlu0
    %v758 = vpop.trf.xlu0
    %v759 = vpop.trf.xlu0
    %v760 = vpop.trf.xlu0
    %v761 = vpop.trf.xlu0
    %v762 = vpop.trf.xlu0
    %v763 = vpop.trf.xlu0
    %764 = vxpose.xlu0.b32.start [1/16] %v648, 128
    %765 = vxpose.xlu0.b32.cont [2/16] %v654, 128
    %766 = vxpose.xlu0.b32.cont [3/16] %v660, 128
    %767 = vxpose.xlu0.b32.cont [4/16] %v666, 128
    %768 = vxpose.xlu0.b32.cont [5/16] 0.0, 128
    %769 = vxpose.xlu0.b32.cont [6/16] 0.0, 128
    %770 = vxpose.xlu0.b32.cont [7/16] 0.0, 128
    %771 = vxpose.xlu0.b32.cont [8/16] 0.0, 128
    %772 = vxpose.xlu0.b32.cont [9/16] 0.0, 128
    %773 = vxpose.xlu0.b32.cont [10/16] 0.0, 128
    %774 = vxpose.xlu0.b32.cont [11/16] 0.0, 128
    %775 = vxpose.xlu0.b32.cont [12/16] 0.0, 128
    %776 = vxpose.xlu0.b32.cont [13/16] 0.0, 128
    %777 = vxpose.xlu0.b32.cont [14/16] 0.0, 128
    %778 = vxpose.xlu0.b32.cont [15/16] 0.0, 128
    %779 = vxpose.xlu0.b32.end [16/16] 0.0, 128
    %v780 = vpop.trf.xlu0
    %v781 = vpop.trf.xlu0
    %v782 = vpop.trf.xlu0
    %v783 = vpop.trf.xlu0
    %v784 = vpop.trf.xlu0
    %v785 = vpop.trf.xlu0
    %v786 = vpop.trf.xlu0
    %v787 = vpop.trf.xlu0
    %v788 = vpop.trf.xlu0
    %v789 = vpop.trf.xlu0
    %v790 = vpop.trf.xlu0
    %v791 = vpop.trf.xlu0
    %v792 = vpop.trf.xlu0
    %v793 = vpop.trf.xlu0
    %v794 = vpop.trf.xlu0
    %v795 = vpop.trf.xlu0
    %796 = vst.msk [vmem:[%s7] sm:$0xff] %vm211, %v684
    %797 = vst.msk [vmem:[%s7 + $0x8] sm:$0xff] %vm211, %v685
    %798 = vst.msk [vmem:[%s7 + $0x10] sm:$0xff] %vm211, %v686
    %799 = vst.msk [vmem:[%s7 + $0x18] sm:$0xff] %vm211, %v687
    %800 = vst.msk [vmem:[%s7 + $0x20] sm:$0xff] %vm211, %v688
    %801 = vst.msk [vmem:[%s7 + $0x28] sm:$0xff] %vm211, %v689
    %802 = vst.msk [vmem:[%s7 + $0x30] sm:$0xff] %vm211, %v690
    %803 = vst.msk [vmem:[%s7 + $0x38] sm:$0xff] %vm211, %v691
    %804 = vst.msk [vmem:[%s7 + $0x40] sm:$0xff] %vm211, %v692
    %805 = vst.msk [vmem:[%s7 + $0x48] sm:$0xff] %vm211, %v693
    %806 = vst.msk [vmem:[%s7 + $0x50] sm:$0xff] %vm211, %v694
    %807 = vst.msk [vmem:[%s7 + $0x58] sm:$0xff] %vm211, %v695
    %808 = vst.msk [vmem:[%s7 + $0x60] sm:$0xff] %vm211, %v696
    %809 = vst.msk [vmem:[%s7 + $0x68] sm:$0xff] %vm211, %v697
    %810 = vst.msk [vmem:[%s7 + $0x70] sm:$0xff] %vm211, %v698
    %811 = vst.msk [vmem:[%s7 + $0x78] sm:$0xff] %vm211, %v699
    %812 = vst.msk [vmem:[%s7 + $0x80] sm:$0xff] %vm211, %v716
    %813 = vst.msk [vmem:[%s7 + $0x88] sm:$0xff] %vm211, %v717
    %814 = vst.msk [vmem:[%s7 + $0x90] sm:$0xff] %vm211, %v718
    %815 = vst.msk [vmem:[%s7 + $0x98] sm:$0xff] %vm211, %v719
    %816 = vst.msk [vmem:[%s7 + $0xa0] sm:$0xff] %vm211, %v720
    %817 = vst.msk [vmem:[%s7 + $0xa8] sm:$0xff] %vm211, %v721
    %818 = vst.msk [vmem:[%s7 + $0xb0] sm:$0xff] %vm211, %v722
    %819 = vst.msk [vmem:[%s7 + $0xb8] sm:$0xff] %vm211, %v723
    %820 = vst.msk [vmem:[%s7 + $0xc0] sm:$0xff] %vm211, %v724
    %821 = vst.msk [vmem:[%s7 + $0xc8] sm:$0xff] %vm211, %v725
    %822 = vst.msk [vmem:[%s7 + $0xd0] sm:$0xff] %vm211, %v726
    %823 = vst.msk [vmem:[%s7 + $0xd8] sm:$0xff] %vm211, %v727
    %824 = vst.msk [vmem:[%s7 + $0xe0] sm:$0xff] %vm211, %v728
    %825 = vst.msk [vmem:[%s7 + $0xe8] sm:$0xff] %vm211, %v729
    %826 = vst.msk [vmem:[%s7 + $0xf0] sm:$0xff] %vm211, %v730
    %827 = vst.msk [vmem:[%s7 + $0xf8] sm:$0xff] %vm211, %v731
    %828 = vst.msk [vmem:[%s7 + $0x100] sm:$0xff] %vm211, %v748
    %829 = vst.msk [vmem:[%s7 + $0x108] sm:$0xff] %vm211, %v749
    %830 = vst.msk [vmem:[%s7 + $0x110] sm:$0xff] %vm211, %v750
    %831 = vst.msk [vmem:[%s7 + $0x118] sm:$0xff] %vm211, %v751
    %832 = vst.msk [vmem:[%s7 + $0x120] sm:$0xff] %vm211, %v752
    %833 = vst.msk [vmem:[%s7 + $0x128] sm:$0xff] %vm211, %v753
    %834 = vst.msk [vmem:[%s7 + $0x130] sm:$0xff] %vm211, %v754
    %835 = vst.msk [vmem:[%s7 + $0x138] sm:$0xff] %vm211, %v755
    %836 = vst.msk [vmem:[%s7 + $0x140] sm:$0xff] %vm211, %v756
    %837 = vst.msk [vmem:[%s7 + $0x148] sm:$0xff] %vm211, %v757
    %838 = vst.msk [vmem:[%s7 + $0x150] sm:$0xff] %vm211, %v758
    %839 = vst.msk [vmem:[%s7 + $0x158] sm:$0xff] %vm211, %v759
    %840 = vst.msk [vmem:[%s7 + $0x160] sm:$0xff] %vm211, %v760
    %841 = vst.msk [vmem:[%s7 + $0x168] sm:$0xff] %vm211, %v761
    %842 = vst.msk [vmem:[%s7 + $0x170] sm:$0xff] %vm211, %v762
    %843 = vst.msk [vmem:[%s7 + $0x178] sm:$0xff] %vm211, %v763
    %844 = vst.msk [vmem:[%s7 + $0x180] sm:$0xff] %vm211, %v780
    %845 = vst.msk [vmem:[%s7 + $0x188] sm:$0xff] %vm211, %v781
    %846 = vst.msk [vmem:[%s7 + $0x190] sm:$0xff] %vm211, %v782
    %847 = vst.msk [vmem:[%s7 + $0x198] sm:$0xff] %vm211, %v783
    %848 = vst.msk [vmem:[%s7 + $0x1a0] sm:$0xff] %vm211, %v784
    %849 = vst.msk [vmem:[%s7 + $0x1a8] sm:$0xff] %vm211, %v785
    %850 = vst.msk [vmem:[%s7 + $0x1b0] sm:$0xff] %vm211, %v786
    %851 = vst.msk [vmem:[%s7 + $0x1b8] sm:$0xff] %vm211, %v787
    %852 = vst.msk [vmem:[%s7 + $0x1c0] sm:$0xff] %vm211, %v788
    %853 = vst.msk [vmem:[%s7 + $0x1c8] sm:$0xff] %vm211, %v789
    %854 = vst.msk [vmem:[%s7 + $0x1d0] sm:$0xff] %vm211, %v790
    %855 = vst.msk [vmem:[%s7 + $0x1d8] sm:$0xff] %vm211, %v791
    %856 = vst.msk [vmem:[%s7 + $0x1e0] sm:$0xff] %vm211, %v792
    %857 = vst.msk [vmem:[%s7 + $0x1e8] sm:$0xff] %vm211, %v793
    %858 = vst.msk [vmem:[%s7 + $0x1f0] sm:$0xff] %vm211, %v794
    %859 = vst.msk [vmem:[%s7 + $0x1f8] sm:$0xff] %vm211, %v795
    // Predicated region
    $region38: #{tpu_custom_call.1} parent=1 // pred_check
      _
    $region39: #{tpu_custom_call.1} parent=1 // pred_check_branch
      %861 = sbr.rel (0) target = $region41
    $region40: #{tpu_custom_call.1} parent=1 // pred_region
      _
    $region41: #{tpu_custom_call.1} parent=1 // pred_fallthru
      _
    // Predicated region
    $region42: #{tpu_custom_call.1} parent=1 // pred_check
      _
    $region43: #{tpu_custom_call.1} parent=1 // pred_check_branch
      %863 = sbr.rel (0) target = $region45
    $region44: #{tpu_custom_call.1} parent=1 // pred_region
      _
    $region45: #{tpu_custom_call.1} parent=1 // pred_fallthru
      _
    %864 = vsyncpa [#allocation3], 1
    %865 = vsyncpa [#allocation5], 1

</llo_original>
